<compile_context>
chip_gen: v5e
topology: v5e:2x2
jax: 0.10.0
libtpu: 0.0.40
codegen_flags: <defaults>
</compile_context>

<pallas_src>
import functools

import jax
import jax.numpy as jnp
from jax.experimental import pallas as pl
from jax.experimental.pallas import tpu as pltpu


def _recip(x):
    """EUP approx reciprocal + one Newton step (full f32 accuracy, no VALU divide)."""
    r = pl.reciprocal(x, approx=True)
    return r * (2.0 - x * r)


def gcn_re_kernel(text_ref, w_ref, adj_ref, bias_ref, out_ref, *, Bt, R, N, Fh):
    F_out = R * Fh

    # hidden = text @ W, once for the whole batch block.               (MXU)
    x2 = text_ref[...].reshape(Bt * N, -1)                             # (Bt*N, Fin)
    hidden = jnp.dot(x2, w_ref[...],
                     preferred_element_type=jnp.float32)               # (Bt*N, Fh)

    # Append a ones column so the adjacency matmul also produces each row's
    # degree (sum over the contracted axis) for free on the MXU.
    ones = jnp.ones((Bt * N, 1), dtype=jnp.float32)
    hidden_aug = jnp.concatenate([hidden, ones], axis=-1)              # (Bt*N, Fh+1)
    hidden_aug = hidden_aug.reshape(Bt, N, Fh + 1)

    # One batched adjacency matmul for all relations of all Bt elements. (MXU)
    # adj arrives bf16 (exact for 0/1); upcast so accumulation is pure f32.
    a3 = adj_ref[...].astype(jnp.float32).reshape(Bt, R * N, N)        # (Bt, R*N, N)
    res = jnp.einsum('bmj,bjf->bmf', a3, hidden_aug,
                     preferred_element_type=jnp.float32)               # (Bt, R*N, Fh+1)

    prod = res[..., :Fh]                                               # (Bt, R*N, Fh)
    denom = res[..., Fh:Fh + 1] + 1.0                                  # (Bt, R*N, 1)
    out3 = prod * _recip(denom)                                        # (Bt, R*N, Fh)
    out4 = out3.reshape(Bt, R, N, Fh)

    # Activations: one ReLU pass over everything, softmax on relation 0 only
    # (softmax uses the pre-ReLU values, matching the torch forward).
    relu4 = jnp.maximum(out4, 0.0)                                     # (Bt, R, N, Fh)
    o0 = out4[:, 0]                                                    # (Bt, N, Fh)
    m = jnp.max(o0, axis=-1, keepdims=True)
    e = jnp.exp(o0 - m)
    sm = e * _recip(jnp.sum(e, axis=-1, keepdims=True))                # (Bt, N, Fh)

    # Single store per block in the final concatenated layout + bias.
    pieces = [sm] + [relu4[:, r] for r in range(1, R)]                 # R x (Bt, N, Fh)
    out_ref[...] = (jnp.concatenate(pieces, axis=-1)
                    + bias_ref[...].reshape(1, 1, F_out))              # (Bt, N, R*Fh)


def _pick_block_b(B, N, target_rows=256):
    """Largest divisor of B with block_b*N <= target_rows rows, while keeping
    >= 2 grid steps when B allows (so v7x megacore has work to shard)."""
    cands = [d for d in range(1, B + 1) if B % d == 0]
    best = 1
    for d in cands:
        if d * N <= target_rows:
            best = d
    if B // best < 2:
        for d in reversed(cands):
            if d < best and B // d >= 2:
                best = d
                break
    return best


def graph_convolution_re(text, adj_re, weight, bias, *, block_b=None,
                         adj_dtype=jnp.bfloat16):
    """Pallas implementation of GraphConvolutionRE.forward (frc_lin=False, bias=True).

    adj_dtype=bf16 is exact for 0/1 adjacencies (the module's use case); pass
    jnp.float32 if weighted (non-binary) adjacencies must be bit-exact.
    """
    B, N, Fin = text.shape
    Badj, R, N1, N2 = adj_re.shape
    assert Badj == B and N1 == N and N2 == N
    Fh = weight.shape[1]
    F_out = R * Fh
    assert bias.shape == (F_out,)

    Bt = _pick_block_b(B, N) if block_b is None else block_b
    assert B % Bt == 0, (B, Bt)

    bias2 = bias.reshape(1, F_out).astype(jnp.float32)
    kernel = functools.partial(gcn_re_kernel, Bt=Bt, R=R, N=N, Fh=Fh)

    # NOTE: at large N/R re-derive the adj block for the VMEM budget (v7x has
    # 64 MiB physical / 32 MiB scoped; v5e scoped default is 16 MiB) and raise
    # vmem_limit_bytes or tile N/R into an extra 'arbitrary' grid axis.
    return pl.pallas_call(
        kernel,
        out_shape=jax.ShapeDtypeStruct((B, N, F_out), jnp.float32),
        grid=(B // Bt,),
        in_specs=[
            pl.BlockSpec((Bt, N, Fin), lambda b: (b, 0, 0)),        # text block
            pl.BlockSpec((Fin, Fh), lambda b: (0, 0)),              # weight (full)
            pl.BlockSpec((Bt, R, N, N), lambda b: (b, 0, 0, 0)),    # adj block (bf16)
            pl.BlockSpec((1, F_out), lambda b: (0, 0)),             # bias (full row)
        ],
        out_specs=pl.BlockSpec((Bt, N, F_out), lambda b: (b, 0, 0)),
        compiler_params=pltpu.CompilerParams(
            dimension_semantics=("parallel",)),
    )(text.astype(jnp.float32), weight.astype(jnp.float32),
      adj_re.astype(adj_dtype), bias2)


def graph_convolution_re_ref(text, adj_re, weight, bias):
    """Pure-JAX reference mirroring the PyTorch forward exactly."""
    hidden = jnp.matmul(text.astype(jnp.float32), weight)              # (B, N, Fh)
    adj = jnp.transpose(adj_re, (1, 0, 2, 3))                          # (R, B, N, N)
    denom = jnp.sum(adj[0], axis=2, keepdims=True) + 1.0
    output = jnp.matmul(adj[0], hidden) / denom
    output = jax.nn.softmax(output, axis=-1)
    for i in range(1, adj.shape[0]):
        d = jnp.sum(adj[i], axis=2, keepdims=True) + 1.0
        o2 = jnp.matmul(adj[i], hidden) / d
        o2 = jnp.maximum(o2, 0.0)
        output = jnp.concatenate([output, o2], axis=2)
    return output + bias


if __name__ == "__main__":
    # Module hyperparameters (small, consistent with the forward pass).
    B, N = 2, 16
    in_features = 32
    out_features = 32
    rela_len = 4
    Fh = out_features // rela_len                                      # 8

    key = jax.random.PRNGKey(0)
    k_text, k_adj, k_w, k_b = jax.random.split(key, 4)

    text = jax.random.normal(k_text, (B, N, in_features), dtype=jnp.float32)
    # Binary adjacency tensors per relation, as in a GCN over relation graphs.
    adj_re = jax.random.bernoulli(
        k_adj, p=0.3, shape=(B, rela_len, N, N)).astype(jnp.float32)

    # Deterministic synthetic parameter init (nn.Parameter shapes from __init__).
    weight = 0.1 * jax.random.normal(k_w, (in_features, Fh), dtype=jnp.float32)
    bias = 0.1 * jax.random.normal(k_b, (out_features,), dtype=jnp.float32)

    out = graph_convolution_re(text, adj_re, weight, bias)
    out = jax.block_until_ready(out)

    ref = graph_convolution_re_ref(text, adj_re, weight, bias)
    assert out.shape == (B, N, out_features), out.shape
    assert jnp.allclose(out, ref, rtol=1e-4, atol=1e-4), float(
        jnp.max(jnp.abs(out - ref)))

    print("KERNEL_OK")
</pallas_src>

<mosaic_0001>
module attributes {stable_mosaic.version = 11 : i64} {
  func.func @gcn_re_kernel(%arg0: i32, %arg1: memref<1x16x32xf32, #tpu.memory_space<vmem>>, %arg2: memref<32x8xf32, #tpu.memory_space<vmem>>, %arg3: memref<1x4x16x16xbf16, #tpu.memory_space<vmem>>, %arg4: memref<1x32xf32, #tpu.memory_space<vmem>>, %arg5: memref<1x16x32xf32, #tpu.memory_space<vmem>>) attributes {dimension_semantics = [#tpu.dimension_semantics<parallel>], iteration_bounds = array<i64: 2>, scalar_prefetch = 0 : i64, scratch_operands = 0 : i64, tpu.core_type = #tpu.core_type<tc>, window_params = [{transform_indices = @transform_0, window_bounds = array<i64: 1, 16, 32>}, {pipeline_mode = #tpu.pipeline_mode<synchronous>, transform_indices = @transform_1, window_bounds = array<i64: 32, 8>}, {transform_indices = @transform_2, window_bounds = array<i64: 1, 4, 16, 16>}, {pipeline_mode = #tpu.pipeline_mode<synchronous>, transform_indices = @transform_3, window_bounds = array<i64: 1, 32>}, {transform_indices = @transform_4, window_bounds = array<i64: 1, 16, 32>}]} {
    %c0 = arith.constant 0 : index
    %c0_0 = arith.constant 0 : index
    %c0_1 = arith.constant 0 : index
    %0 = vector.load %arg1[%c0, %c0_0, %c0_1] : memref<1x16x32xf32, #tpu.memory_space<vmem>>, vector<1x16x32xf32>
    %1 = vector.shape_cast %0 : vector<1x16x32xf32> to vector<16x32xf32>
    %c0_2 = arith.constant 0 : index
    %c0_3 = arith.constant 0 : index
    %2 = vector.load %arg2[%c0_2, %c0_3] : memref<32x8xf32, #tpu.memory_space<vmem>>, vector<32x8xf32>
    %cst = arith.constant dense<0.000000e+00> : vector<16x8xf32>
    %3 = tpu.matmul %1, %2, %cst {dimension_numbers = #tpu.dot_dimension_numbers<[1], [0], [0], [1], [0, 0, 1, 1], [], []>} : vector<16x32xf32>, vector<32x8xf32>, vector<16x8xf32> -> vector<16x8xf32>
    %cst_4 = arith.constant 1.000000e+00 : f32
    %4 = vector.broadcast %cst_4 : f32 to vector<16x1xf32>
    %5 = tpu.concatenate %3, %4 in 1 : vector<16x8xf32>, vector<16x1xf32> -> vector<16x9xf32>
    %6 = vector.shape_cast %5 : vector<16x9xf32> to vector<1x16x9xf32>
    %c0_5 = arith.constant 0 : index
    %c0_6 = arith.constant 0 : index
    %c0_7 = arith.constant 0 : index
    %c0_8 = arith.constant 0 : index
    %7 = vector.load %arg3[%c0_5, %c0_6, %c0_7, %c0_8] : memref<1x4x16x16xbf16, #tpu.memory_space<vmem>>, vector<1x4x16x16xbf16>
    %8 = arith.extf %7 : vector<1x4x16x16xbf16> to vector<1x4x16x16xf32>
    %9 = vector.shape_cast %8 : vector<1x4x16x16xf32> to vector<1x64x16xf32>
    "tpu.trace_start"() <{level = 10 : i32, message = "bmj,bjf->bmf"}> : () -> ()
    %cst_9 = arith.constant dense<0.000000e+00> : vector<1x64x9xf32>
    %10 = tpu.matmul %9, %6, %cst_9 {dimension_numbers = #tpu.dot_dimension_numbers<[2], [1], [1], [2], [0, 0, 0, 1, 1, 2], [0], [0]>} : vector<1x64x16xf32>, vector<1x16x9xf32>, vector<1x64x9xf32> -> vector<1x64x9xf32>
    "tpu.trace_stop"() : () -> ()
    %11 = vector.extract_strided_slice %10 {offsets = [0, 0, 0], sizes = [1, 64, 8], strides = [1, 1, 1]} : vector<1x64x9xf32> to vector<1x64x8xf32>
    %12 = vector.extract_strided_slice %10 {offsets = [0, 0, 8], sizes = [1, 64, 1], strides = [1, 1, 1]} : vector<1x64x9xf32> to vector<1x64x1xf32>
    %cst_10 = arith.constant 1.000000e+00 : f32
    %13 = vector.broadcast %cst_10 : f32 to vector<1x64x1xf32>
    %14 = arith.addf %12, %13 : vector<1x64x1xf32>
    %15 = tpu.reciprocal %14 {approx = true} : vector<1x64x1xf32> -> vector<1x64x1xf32>
    %16 = arith.mulf %14, %15 : vector<1x64x1xf32>
    %cst_11 = arith.constant 2.000000e+00 : f32
    %17 = vector.broadcast %cst_11 : f32 to vector<1x64x1xf32>
    %18 = arith.subf %17, %16 : vector<1x64x1xf32>
    %19 = arith.mulf %15, %18 : vector<1x64x1xf32>
    %20 = vector.broadcast %19 : vector<1x64x1xf32> to vector<1x64x8xf32>
    %21 = arith.mulf %11, %20 : vector<1x64x8xf32>
    %22 = vector.shape_cast %21 : vector<1x64x8xf32> to vector<1x4x16x8xf32>
    %cst_12 = arith.constant 0.000000e+00 : f32
    %23 = vector.broadcast %cst_12 : f32 to vector<1x4x16x8xf32>
    %24 = arith.maximumf %22, %23 : vector<1x4x16x8xf32>
    %25 = vector.extract_strided_slice %22 {offsets = [0, 0, 0, 0], sizes = [1, 1, 16, 8], strides = [1, 1, 1, 1]} : vector<1x4x16x8xf32> to vector<1x1x16x8xf32>
    %26 = vector.shape_cast %25 : vector<1x1x16x8xf32> to vector<1x16x8xf32>
    %cst_13 = arith.constant dense<0xFF800000> : vector<1x16xf32>
    %27 = vector.multi_reduction <maximumf>, %26, %cst_13 [2] : vector<1x16x8xf32> to vector<1x16xf32>
    %28 = vector.shape_cast %27 : vector<1x16xf32> to vector<1x16x1xf32>
    %29 = vector.broadcast %28 : vector<1x16x1xf32> to vector<1x16x8xf32>
    %30 = arith.subf %26, %29 : vector<1x16x8xf32>
    %31 = math.exp %30 : vector<1x16x8xf32>
    %cst_14 = arith.constant dense<0.000000e+00> : vector<1x16xf32>
    %32 = vector.multi_reduction <add>, %31, %cst_14 [2] : vector<1x16x8xf32> to vector<1x16xf32>
    %33 = vector.shape_cast %32 : vector<1x16xf32> to vector<1x16x1xf32>
    %34 = tpu.reciprocal %33 {approx = true} : vector<1x16x1xf32> -> vector<1x16x1xf32>
    %35 = arith.mulf %33, %34 : vector<1x16x1xf32>
    %cst_15 = arith.constant 2.000000e+00 : f32
    %36 = vector.broadcast %cst_15 : f32 to vector<1x16x1xf32>
    %37 = arith.subf %36, %35 : vector<1x16x1xf32>
    %38 = arith.mulf %34, %37 : vector<1x16x1xf32>
    %39 = vector.broadcast %38 : vector<1x16x1xf32> to vector<1x16x8xf32>
    %40 = arith.mulf %31, %39 : vector<1x16x8xf32>
    %41 = vector.extract_strided_slice %24 {offsets = [0, 1, 0, 0], sizes = [1, 1, 16, 8], strides = [1, 1, 1, 1]} : vector<1x4x16x8xf32> to vector<1x1x16x8xf32>
    %42 = vector.shape_cast %41 : vector<1x1x16x8xf32> to vector<1x16x8xf32>
    %43 = vector.extract_strided_slice %24 {offsets = [0, 2, 0, 0], sizes = [1, 1, 16, 8], strides = [1, 1, 1, 1]} : vector<1x4x16x8xf32> to vector<1x1x16x8xf32>
    %44 = vector.shape_cast %43 : vector<1x1x16x8xf32> to vector<1x16x8xf32>
    %45 = vector.extract_strided_slice %24 {offsets = [0, 3, 0, 0], sizes = [1, 1, 16, 8], strides = [1, 1, 1, 1]} : vector<1x4x16x8xf32> to vector<1x1x16x8xf32>
    %46 = vector.shape_cast %45 : vector<1x1x16x8xf32> to vector<1x16x8xf32>
    %47 = tpu.concatenate %40, %42, %44, %46 in 2 : vector<1x16x8xf32>, vector<1x16x8xf32>, vector<1x16x8xf32>, vector<1x16x8xf32> -> vector<1x16x32xf32>
    %c0_16 = arith.constant 0 : index
    %c0_17 = arith.constant 0 : index
    %48 = vector.load %arg4[%c0_16, %c0_17] : memref<1x32xf32, #tpu.memory_space<vmem>>, vector<1x32xf32>
    %49 = vector.shape_cast %48 : vector<1x32xf32> to vector<1x1x32xf32>
    %50 = vector.broadcast %49 : vector<1x1x32xf32> to vector<1x16x32xf32>
    %51 = arith.addf %47, %50 : vector<1x16x32xf32>
    %c0_18 = arith.constant 0 : index
    %c0_19 = arith.constant 0 : index
    %c0_20 = arith.constant 0 : index
    %52 = vector.load %arg5[%c0_18, %c0_19, %c0_20] : memref<1x16x32xf32, #tpu.memory_space<vmem>>, vector<1x16x32xf32>
    tpu.vector_store %arg5[%c0_18, %c0_19, %c0_20], %51 {strides = array<i32>} : memref<1x16x32xf32, #tpu.memory_space<vmem>>, vector<1x16x32xf32>,
    return
  }
  func.func @transform_0(%arg0: i32) -> (i32, i32, i32) {
    %c0_i32 = arith.constant 0 : i32
    %c0_i32_0 = arith.constant 0 : i32
    %c0_i32_1 = arith.constant 0 : i32
    return %arg0, %c0_i32, %c0_i32_0 : i32, i32, i32
  }
  func.func @transform_1(%arg0: i32) -> (i32, i32) {
    %c0_i32 = arith.constant 0 : i32
    %c0_i32_0 = arith.constant 0 : i32
    %c0_i32_1 = arith.constant 0 : i32
    return %c0_i32, %c0_i32_0 : i32, i32
  }
  func.func @transform_2(%arg0: i32) -> (i32, i32, i32, i32) {
    %c0_i32 = arith.constant 0 : i32
    %c0_i32_0 = arith.constant 0 : i32
    %c0_i32_1 = arith.constant 0 : i32
    %c0_i32_2 = arith.constant 0 : i32
    return %arg0, %c0_i32, %c0_i32_0, %c0_i32_1 : i32, i32, i32, i32
  }
  func.func @transform_3(%arg0: i32) -> (i32, i32) {
    %c0_i32 = arith.constant 0 : i32
    %c0_i32_0 = arith.constant 0 : i32
    %c0_i32_1 = arith.constant 0 : i32
    return %c0_i32, %c0_i32_0 : i32, i32
  }
  func.func @transform_4(%arg0: i32) -> (i32, i32, i32) {
    %c0_i32 = arith.constant 0 : i32
    %c0_i32_0 = arith.constant 0 : i32
    %c0_i32_1 = arith.constant 0 : i32
    return %arg0, %c0_i32, %c0_i32_0 : i32, i32, i32
  }
}

</mosaic_0001>

<llo_original>
// kernel: tpu_custom_call.1
$region0: #{tpu_custom_call.1}
  #allocation0 [shape = 'u32[]', space=smem, size = 0x4, offset = 0x4, fixed_abs, tag = 'smem constant byte address 0x4 - core index']
  #allocation1 [shape = 'u32[72,128]{1,0:T(1,128)}', space=vmem, size = 0x9000, scoped, tag = 'internal scratch']
  %s0 = inlined_call_operand.vmem [shape: f32[2,16,32], index: 0, kind: input, shape index: {}]
  %s1 = inlined_call_operand.vmem [shape: f32[32,8], index: 1, kind: input, shape index: {}]
  %s2 = inlined_call_operand.hbm [shape: bf16[2,4,16,16], index: 2, kind: input, shape index: {}]
  %s3 = inlined_call_operand.vmem [shape: f32[1,32], index: 3, kind: input, shape index: {}]
  %s4 = inlined_call_operand.hbm [shape: f32[2,16,32], index: 4, kind: output, shape index: {}]
  %s5 = sld [smem:[#allocation0]]
  $region53: #{tpu_custom_call.1} parent=0
    _
  %s7 = ssub.s32 1, %s5
  %s8 = scalar_select 0, %s7, %s5
  $region1: #{tpu_custom_call.1} parent=0
    #allocation2 [shape = 'u8[32768]{0}', space=vmem, size = 0x8000, scoped, tag = 'input window, operand 2']
    #allocation3 [shape = 's32[2]{0}', space=sflag, size = 0x8, scoped, tag = 'scoped memory for tpu_custom_call.1']
    #allocation4 [shape = 's32[2]{0}', space=sflag, size = 0x8, scoped, tag = 'scoped memory for tpu_custom_call.1']
    #allocation5 [shape = 'u8[16384]{0}', space=vmem, size = 0x4000, scoped, tag = 'output window, operand 0']
    %9 = vsyncpa [#allocation3], 0
    %s10 = scalar_lea.sflag [#allocation3], 1
    %11 = vsyncpa %s10, 0
    %12 = vsyncpa [#allocation4], 0
    %s13 = scalar_lea.sflag [#allocation4], 1
    %14 = vsyncpa %s13, 0
    loop: start=0, step=1, limit=4
    $region2: #{tpu_custom_call.1} parent=1 // loop_pre_header
      _
    $region3: #{tpu_custom_call.1} parent=1 // loop_header
      %s16 = sphi 0, %s20
      %p17 = scmp.ge.s32.totalorder %s16, 4
      %s26 = sphi 0, %s28
      %s29 = sphi 0, %s26
      %s30 = sphi 0, %s29
      %s46 = sphi 0, %s30
      %s50 = sphi 0, %s50
      %s52 = sphi 0, %s50
      %s53 = sphi 0, %s52
      %s67 = sphi 0, %s53
      %s73 = sphi 0, %s75
      %s76 = sphi 0, %s73
      %s77 = sphi 0, %s76
      %s93 = sphi 0, %s77
      %s97 = sphi 0, %s97
      %s99 = sphi 0, %s97
      %s100 = sphi 0, %s99
      %s114 = sphi 0, %s100
      %s120 = sphi 0, %s122
      %s123 = sphi 0, %s120
      %s124 = sphi 0, %s123
      %s140 = sphi 0, %s124
    $region4: #{tpu_custom_call.1} parent=1 // loop_header_branch
      %19 = sbr.rel (%p17) target = $region8
    $region5: #{tpu_custom_call.1} parent=1 // loop_body
      %s21 = ssub.s32 %s16, 1
      %s22 = ssub.s32 %s16, 2
      %s23 = sadd.s32 %s16, 1
      %s24 = ssub.s32 %s16, %s23
      %p25 = scmp.eq.s32.totalorder %s24, 0
      %s27 = sadd.s32 %s26, 1
      %s28 = scalar_select %p25, %s26, %s27
      %p31 = pneg %p25
      %p32 = scmp.eq.s32.totalorder %s16, 1
      %p33 = por %p31, %p32
      %p34 = scmp.ne.s32.totalorder %s26, %s29
      %p35 = scmp.eq.s32.totalorder %s16, 0
      %p36 = por %p34, %p35
      %p37 = scmp.ne.s32.totalorder %s26, %s29
      %p38 = scmp.eq.s32.totalorder %s21, 1
      %p39 = por %p37, %p38
      %p40 = scmp.ne.s32.totalorder %s29, %s30
      %p41 = scmp.eq.s32.totalorder %s21, 0
      %p42 = por %p40, %p41
      %p43 = scmp.ne.s32.totalorder %s29, %s30
      %p44 = scmp.eq.s32.totalorder %s22, 1
      %p45 = por %p43, %p44
      %p47 = scmp.ne.s32.totalorder %s30, %s46
      %p48 = scmp.eq.s32.totalorder %s22, 0
      %p49 = por %p47, %p48
      %s51 = sadd.s32 %s50, 1
      %p54 = scmp.eq.s32.totalorder %s16, 1
      %p55 = scmp.ne.s32.totalorder %s50, %s52
      %p56 = scmp.eq.s32.totalorder %s16, 0
      %p57 = por %p55, %p56
      %p58 = scmp.ne.s32.totalorder %s50, %s52
      %p59 = scmp.eq.s32.totalorder %s21, 1
      %p60 = por %p58, %p59
      %p61 = scmp.ne.s32.totalorder %s52, %s53
      %p62 = scmp.eq.s32.totalorder %s21, 0
      %p63 = por %p61, %p62
      %p64 = scmp.ne.s32.totalorder %s52, %s53
      %p65 = scmp.eq.s32.totalorder %s22, 1
      %p66 = por %p64, %p65
      %p68 = scmp.ne.s32.totalorder %s53, %s67
      %p69 = scmp.eq.s32.totalorder %s22, 0
      %p70 = por %p68, %p69
      %s71 = ssub.s32 %s16, %s23
      %p72 = scmp.eq.s32.totalorder %s71, 0
      %s74 = sadd.s32 %s73, 1
      %s75 = scalar_select %p72, %s73, %s74
      %p78 = pneg %p72
      %p79 = scmp.eq.s32.totalorder %s16, 1
      %p80 = por %p78, %p79
      %p81 = scmp.ne.s32.totalorder %s73, %s76
      %p82 = scmp.eq.s32.totalorder %s16, 0
      %p83 = por %p81, %p82
      %p84 = scmp.ne.s32.totalorder %s73, %s76
      %p85 = scmp.eq.s32.totalorder %s21, 1
      %p86 = por %p84, %p85
      %p87 = scmp.ne.s32.totalorder %s76, %s77
      %p88 = scmp.eq.s32.totalorder %s21, 0
      %p89 = por %p87, %p88
      %p90 = scmp.ne.s32.totalorder %s76, %s77
      %p91 = scmp.eq.s32.totalorder %s22, 1
      %p92 = por %p90, %p91
      %p94 = scmp.ne.s32.totalorder %s77, %s93
      %p95 = scmp.eq.s32.totalorder %s22, 0
      %p96 = por %p94, %p95
      %s98 = sadd.s32 %s97, 1
      %p101 = scmp.eq.s32.totalorder %s16, 1
      %p102 = scmp.ne.s32.totalorder %s97, %s99
      %p103 = scmp.eq.s32.totalorder %s16, 0
      %p104 = por %p102, %p103
      %p105 = scmp.ne.s32.totalorder %s97, %s99
      %p106 = scmp.eq.s32.totalorder %s21, 1
      %p107 = por %p105, %p106
      %p108 = scmp.ne.s32.totalorder %s99, %s100
      %p109 = scmp.eq.s32.totalorder %s21, 0
      %p110 = por %p108, %p109
      %p111 = scmp.ne.s32.totalorder %s99, %s100
      %p112 = scmp.eq.s32.totalorder %s22, 1
      %p113 = por %p111, %p112
      %p115 = scmp.ne.s32.totalorder %s100, %s114
      %p116 = scmp.eq.s32.totalorder %s22, 0
      %p117 = por %p115, %p116
      %s118 = ssub.s32 %s16, %s23
      %p119 = scmp.eq.s32.totalorder %s118, 0
      %s121 = sadd.s32 %s120, 1
      %s122 = scalar_select %p119, %s120, %s121
      %p125 = pneg %p119
      %p126 = scmp.eq.s32.totalorder %s16, 1
      %p127 = por %p125, %p126
      %p128 = scmp.ne.s32.totalorder %s120, %s123
      %p129 = scmp.eq.s32.totalorder %s16, 0
      %p130 = por %p128, %p129
      %p131 = scmp.ne.s32.totalorder %s120, %s123
      %p132 = scmp.eq.s32.totalorder %s21, 1
      %p133 = por %p131, %p132
      %p134 = scmp.ne.s32.totalorder %s123, %s124
      %p135 = scmp.eq.s32.totalorder %s21, 0
      %p136 = por %p134, %p135
      %p137 = scmp.ne.s32.totalorder %s123, %s124
      %p138 = scmp.eq.s32.totalorder %s22, 1
      %p139 = por %p137, %p138
      %p141 = scmp.ne.s32.totalorder %s124, %s140
      %p142 = scmp.eq.s32.totalorder %s22, 0
      %p143 = por %p141, %p142
      %p144 = scmp.le.s32.totalorder 1, %s16
      %p145 = scmp.lt.s32.totalorder %s16, 3
      %p146 = pnand %p144, %p145
      %p147 = pneg %p146
      // Predicated region
      $region9: #{tpu_custom_call.1} parent=5 // pred_check
        _
      $region10: #{tpu_custom_call.1} parent=5 // pred_check_branch
        %149 = sbr.rel (%p146) target = $region12
      $region11: #{tpu_custom_call.1} parent=5 // pred_region
        %s150 = ssub.s32 %s16, 1
        // Predicated region
        $region13: #{tpu_custom_call.1} parent=11 // pred_check
          %p151 = pneg %p63
        $region14: #{tpu_custom_call.1} parent=11 // pred_check_branch
          %153 = sbr.rel (%p151) target = $region16
        $region15: #{tpu_custom_call.1} parent=11 // pred_region
          _
        $region16: #{tpu_custom_call.1} parent=11 // pred_fallthru
          _
        // Predicated region
        $region17: #{tpu_custom_call.1} parent=11 // pred_check
          %p154 = pneg %p110
        $region18: #{tpu_custom_call.1} parent=11 // pred_check_branch
          %156 = sbr.rel (%p154) target = $region20
        $region19: #{tpu_custom_call.1} parent=11 // pred_region
          _
        $region20: #{tpu_custom_call.1} parent=11 // pred_fallthru
          _
      $region12: #{tpu_custom_call.1} parent=5 // pred_fallthru
        _
      %p157 = scmp.lt.s32.totalorder %s16, 2
      // Predicated region
      $region21: #{tpu_custom_call.1} parent=5 // pred_check
        %p158 = pneg %p157
      $region22: #{tpu_custom_call.1} parent=5 // pred_check_branch
        %160 = sbr.rel (%p158) target = $region24
      $region23: #{tpu_custom_call.1} parent=5 // pred_region
        // Predicated region
        $region25: #{tpu_custom_call.1} parent=23 // pred_check
          %p161 = pneg %p36
        $region26: #{tpu_custom_call.1} parent=23 // pred_check_branch
          %163 = sbr.rel (%p161) target = $region28
        $region27: #{tpu_custom_call.1} parent=23 // pred_region
          %p164 = scmp.lt.s32.totalorder %s16, 1
          %s165 = scalar_select %p164, %s16, 1
          %s166 = smul.addr %s165, 2
          %s167 = smul.addr %s166, 8
          %s168 = scalar_lea.vmem %s0, %s167
        $region28: #{tpu_custom_call.1} parent=23 // pred_fallthru
          _
        // Predicated region
        $region29: #{tpu_custom_call.1} parent=23 // pred_check
          %p169 = pneg %p83
        $region30: #{tpu_custom_call.1} parent=23 // pred_check_branch
          %171 = sbr.rel (%p169) target = $region32
        $region31: #{tpu_custom_call.1} parent=23 // pred_region
          %s172 = sand.u32 %s73, 1
          %s173 = scalar_lea.sflag [#allocation3], %s172
          %s174 = sand.u32 %s73, 1
          %s175 = smul.addr %s174, 32
          %s176 = scalar_lea.vmem [#allocation2], %s175
          %178 = vsyncadd %s173, 0
          %s179 = smul.addr %s16, 8
          %s180 = smul.addr %s179, 4
          %s181 = scalar_lea.hbm %s2, %s180
          %s182 = sshll.u32 %s181, 4
          %s183 = int_to_ptr.hbm [resolvable:$true] %s182
          %s184 = sshll.u32 %s176, 4
          %s185 = int_to_ptr.vmem [resolvable:$true] %s184
          %190 = dma.hbm_to_vmem [thread:$0]  %s183, 512, %s185, %s173, 64, 64, 4
        $region32: #{tpu_custom_call.1} parent=23 // pred_fallthru
          _
      $region24: #{tpu_custom_call.1} parent=5 // pred_fallthru
        _
      %p191 = scmp.le.s32.totalorder 1, %s16
      %p192 = scmp.lt.s32.totalorder %s16, 3
      %p193 = pnand %p191, %p192
      %p194 = pneg %p193
      // Predicated region
      $region33: #{tpu_custom_call.1} parent=5 // pred_check
        _
      $region34: #{tpu_custom_call.1} parent=5 // pred_check_branch
        %196 = sbr.rel (%p193) target = $region36
      $region35: #{tpu_custom_call.1} parent=5 // pred_region
        %s197 = ssub.s32 %s16, 1
        %s198 = sand.u32 %s76, 1
        %s199 = scalar_lea.sflag [#allocation3], %s198
        %s200 = sand.u32 %s76, 1
        %s201 = smul.addr %s200, 32
        %s202 = scalar_lea.vmem [#allocation2], %s201
        // Predicated region
        $region37: #{tpu_custom_call.1} parent=35 // pred_check
          %p203 = pneg %p89
        $region38: #{tpu_custom_call.1} parent=35 // pred_check_branch
          %205 = sbr.rel (%p203) target = $region40
        $region39: #{tpu_custom_call.1} parent=35 // pred_region
          %207 = dma.done %s199, 512
        $region40: #{tpu_custom_call.1} parent=35 // pred_fallthru
          _
        %p208 = scmp.lt.s32.totalorder %s21, 1
        %s209 = scalar_select %p208, %s21, 1
        %s210 = smul.addr %s209, 2
        %s211 = smul.addr %s210, 8
        %s212 = scalar_lea.vmem %s0, %s211
        %p213 = pneg %p42
        %p214 = pneg %p39
        %p215 = pneg %p63
        %p216 = pneg %p60
        %s217 = sand.u32 %s76, 1
        %s218 = scalar_lea.sflag [#allocation3], %s217
        %s219 = sand.u32 %s76, 1
        %s220 = smul.addr %s219, 32
        %s221 = scalar_lea.vmem [#allocation2], %s220
        %p222 = pneg %p89
        %p223 = pneg %p86
        %p224 = pneg %p110
        %p225 = pneg %p107
        %p226 = pneg %p136
        %p227 = pneg %p133
        %s228 = sand.u32 %s123, 1
        %s229 = scalar_lea.sflag [#allocation4], %s228
        %s230 = sand.u32 %s123, 1
        %s231 = smul.addr %s230, 16
        %s232 = scalar_lea.vmem [#allocation5], %s231
        %p233 = scmp.lt.s32.totalorder %s21, 1
        %s234 = scalar_select %p233, %s21, 1
        %s235 = smul.addr %s234, 2
        %s236 = smul.addr %s235, 8
        %s237 = scalar_lea.vmem %s0, %s236
        %v238 = vld [vmem:[%s237] sm:$0xff]
        %v239 = vld [vmem:[%s237 + $0x8] sm:$0xff]
        %v240 = vld [vmem:[%s1] sm:$0xff]
        %v241 = vld [vmem:[%s1 + $0x8] sm:$0xff]
        %v242 = vld [vmem:[%s1 + $0x10] sm:$0xff]
        %v243 = vld [vmem:[%s1 + $0x18] sm:$0xff]
        %vm244 = vcmask 261120
        %v246 = vsel %vm244, %v238, 0
        %v249 = vsel %vm244, %v239, 0
        %251 = vmatpush.msra.mxu0 0.0
        %252 = vmatpush.msra.mxu0 0.0
        %253 = vmatpush.msra.mxu0 0.0
        %254 = vmatpush.msra.mxu0 0.0
        %255 = vmatpush.msra.mxu0 0.0
        %256 = vmatpush.msra.mxu0 0.0
        %257 = vmatpush.msra.mxu0 0.0
        %258 = vmatpush.msra.mxu0 0.0
        %259 = vmatpush.msra.mxu0 0.0
        %260 = vmatpush.msra.mxu0 0.0
        %261 = vmatpush.msra.mxu0 0.0
        %262 = vmatpush.msra.mxu0 0.0
        %263 = vmatpush.msra.mxu0 %v243
        %264 = vmatpush.msra.mxu0 %v242
        %265 = vmatpush.msra.mxu0 %v241
        %266 = vmatpush.msra.mxu0 %v240
        %267 = vmatmul.f32.gmra.mxu0 %v246
        %v268 = vpop.f32.mrf.mxu0
        %v269 = vadd.f32 0.0, %v268
        %270 = vmatmul.f32.gmra.mxu0 %v249
        %v271 = vpop.f32.mrf.mxu0
        %v272 = vadd.f32 0.0, %v271
        %273 = vdwg.mxu0
        %vm274 = vcmask 64512
        %v275 = vsel %vm274, %v269, 1.0
        %v276 = vsel %vm274, %v272, 1.0
        %v277 = vld [vmem:[%s202] sm:$0xf]
        %v278 = vld [vmem:[%s202 + $0x4] sm:$0xf]
        %v279 = vld [vmem:[%s202 + $0x8] sm:$0xf]
        %v280 = vld [vmem:[%s202 + $0xc] sm:$0xf]
        %v281 = vld [vmem:[%s202 + $0x10] sm:$0xf]
        %v282 = vld [vmem:[%s202 + $0x14] sm:$0xf]
        %v283 = vld [vmem:[%s202 + $0x18] sm:$0xf]
        %v284 = vld [vmem:[%s202 + $0x1c] sm:$0xf]
        %v285 = vunpack.c.l.bf16 %v277
        %v286 = vunpack.c.l.bf16 %v278
        %v287 = vunpack.c.l.bf16 %v279
        %v288 = vunpack.c.l.bf16 %v280
        %v289 = vunpack.c.l.bf16 %v281
        %v290 = vunpack.c.l.bf16 %v282
        %v291 = vunpack.c.l.bf16 %v283
        %v292 = vunpack.c.l.bf16 %v284
        %vm293 = vcmask 130048
        %v295 = vsel %vm293, %v285, 0
        %v298 = vsel %vm293, %v286, 0
        %v301 = vsel %vm293, %v287, 0
        %v304 = vsel %vm293, %v288, 0
        %v307 = vsel %vm293, %v289, 0
        %v310 = vsel %vm293, %v290, 0
        %v313 = vsel %vm293, %v291, 0
        %v316 = vsel %vm293, %v292, 0
        %318 = vmatpush.msra.mxu0 0.0
        %319 = vmatpush.msra.mxu0 0.0
        %320 = vmatpush.msra.mxu0 0.0
        %321 = vmatpush.msra.mxu0 0.0
        %322 = vmatpush.msra.mxu0 0.0
        %323 = vmatpush.msra.mxu0 0.0
        %324 = vmatpush.msra.mxu0 0.0
        %325 = vmatpush.msra.mxu0 0.0
        %326 = vmatpush.msra.mxu0 0.0
        %327 = vmatpush.msra.mxu0 0.0
        %328 = vmatpush.msra.mxu0 0.0
        %329 = vmatpush.msra.mxu0 0.0
        %330 = vmatpush.msra.mxu0 0.0
        %331 = vmatpush.msra.mxu0 0.0
        %332 = vmatpush.msra.mxu0 %v276
        %333 = vmatpush.msra.mxu0 %v275
        %334 = vmatmul.f32.gmra.mxu0 %v295
        %v335 = vpop.f32.mrf.mxu0
        %v336 = vadd.f32 0.0, %v335
        %337 = vmatmul.f32.gmra.mxu0 %v298
        %v338 = vpop.f32.mrf.mxu0
        %v339 = vadd.f32 0.0, %v338
        %340 = vmatmul.f32.gmra.mxu0 %v301
        %v341 = vpop.f32.mrf.mxu0
        %v342 = vadd.f32 0.0, %v341
        %343 = vmatmul.f32.gmra.mxu0 %v304
        %v344 = vpop.f32.mrf.mxu0
        %v345 = vadd.f32 0.0, %v344
        %346 = vmatmul.f32.gmra.mxu0 %v307
        %v347 = vpop.f32.mrf.mxu0
        %v348 = vadd.f32 0.0, %v347
        %349 = vmatmul.f32.gmra.mxu0 %v310
        %v350 = vpop.f32.mrf.mxu0
        %v351 = vadd.f32 0.0, %v350
        %352 = vmatmul.f32.gmra.mxu0 %v313
        %v353 = vpop.f32.mrf.mxu0
        %v354 = vadd.f32 0.0, %v353
        %355 = vmatmul.f32.gmra.mxu0 %v316
        %v356 = vpop.f32.mrf.mxu0
        %v357 = vadd.f32 0.0, %v356
        %358 = vdwg.mxu0
        %v359 = vadd.f32 %v336, 1.0
        %v360 = vadd.f32 %v339, 1.0
        %v361 = vadd.f32 %v342, 1.0
        %v362 = vadd.f32 %v345, 1.0
        %v363 = vadd.f32 %v348, 1.0
        %v364 = vadd.f32 %v351, 1.0
        %v365 = vadd.f32 %v354, 1.0
        %v366 = vadd.f32 %v357, 1.0
        %v367 = vrcp.pop %v359
        %v368 = vrcp.pop %v360
        %v369 = vrcp.pop %v361
        %v370 = vrcp.pop %v362
        %v371 = vrcp.pop %v363
        %v372 = vrcp.pop %v364
        %v373 = vrcp.pop %v365
        %v374 = vrcp.pop %v366
        %v375 = vmul.f32 %v359, %v367
        %v376 = vmul.f32 %v360, %v368
        %v377 = vmul.f32 %v361, %v369
        %v378 = vmul.f32 %v362, %v370
        %v379 = vmul.f32 %v363, %v371
        %v380 = vmul.f32 %v364, %v372
        %v381 = vmul.f32 %v365, %v373
        %v382 = vmul.f32 %v366, %v374
        %v383 = vsub.f32 2.0, %v375
        %v384 = vsub.f32 2.0, %v376
        %v385 = vsub.f32 2.0, %v377
        %v386 = vsub.f32 2.0, %v378
        %v387 = vsub.f32 2.0, %v379
        %v388 = vsub.f32 2.0, %v380
        %v389 = vsub.f32 2.0, %v381
        %v390 = vsub.f32 2.0, %v382
        %v391 = vmul.f32 %v367, %v383
        %v392 = vmul.f32 %v368, %v384
        %v393 = vmul.f32 %v369, %v385
        %v394 = vmul.f32 %v370, %v386
        %v395 = vmul.f32 %v371, %v387
        %v396 = vmul.f32 %v372, %v388
        %v397 = vmul.f32 %v373, %v389
        %v398 = vmul.f32 %v374, %v390
        %400 = vset.pattern.permute.xlu0 8
        %401 = vperm.xlu0 %400, %v391
        %v402 = vpop.permute.xlu0 %401
        %405 = vset.pattern.permute.xlu0 8
        %406 = vperm.xlu0 %405, %v392
        %v407 = vpop.permute.xlu0 %406
        %410 = vset.pattern.permute.xlu0 8
        %411 = vperm.xlu0 %410, %v393
        %v412 = vpop.permute.xlu0 %411
        %415 = vset.pattern.permute.xlu0 8
        %416 = vperm.xlu0 %415, %v394
        %v417 = vpop.permute.xlu0 %416
        %420 = vset.pattern.permute.xlu0 8
        %421 = vperm.xlu0 %420, %v395
        %v422 = vpop.permute.xlu0 %421
        %425 = vset.pattern.permute.xlu0 8
        %426 = vperm.xlu0 %425, %v396
        %v427 = vpop.permute.xlu0 %426
        %430 = vset.pattern.permute.xlu0 8
        %431 = vperm.xlu0 %430, %v397
        %v432 = vpop.permute.xlu0 %431
        %435 = vset.pattern.permute.xlu0 8
        %436 = vperm.xlu0 %435, %v398
        %v437 = vpop.permute.xlu0 %436
        %v439 = vmul.f32 %v336, %v402
        %v440 = vmul.f32 %v339, %v407
        %v441 = vmul.f32 %v342, %v412
        %v442 = vmul.f32 %v345, %v417
        %v443 = vmul.f32 %v348, %v422
        %v444 = vmul.f32 %v351, %v427
        %v445 = vmul.f32 %v354, %v432
        %v446 = vmul.f32 %v357, %v437
        %v447 = vmax.f32 %v441, 0.0
        %v448 = vmax.f32 %v442, 0.0
        %v449 = vmax.f32 %v443, 0.0
        %v450 = vmax.f32 %v444, 0.0
        %v451 = vmax.f32 %v445, 0.0
        %v452 = vmax.f32 %v446, 0.0
        %v453 = vsel %vm274, %v439, -inf
        %454 = vmax.xlane.f32.xlu0 %v453
        %v455 = vpop.xlane.xlu0 %454
        %v456 = vsel %vm274, %v440, -inf
        %457 = vmax.xlane.f32.xlu0 %v456
        %v458 = vpop.xlane.xlu0 %457
        %v459 = vsub.f32 %v439, %v455
        %v460 = vsub.f32 %v440, %v458
        %v461 = vmul.f32 %v459, 1.442695
        %v462 = vpow.pop %v461
        %v463 = vmul.f32 %v460, 1.442695
        %v464 = vpow.pop %v463
        %v465 = vsel %vm274, %v462, 0.0
        %466 = vadd.xlane.f32.xlu0 %v465
        %v467 = vpop.xlane.xlu0 %466
        %v468 = vsel %vm274, %v464, 0.0
        %469 = vadd.xlane.f32.xlu0 %v468
        %v470 = vpop.xlane.xlu0 %469
        %v471 = vrcp.pop %v467
        %v472 = vrcp.pop %v470
        %v473 = vmul.f32 %v467, %v471
        %v474 = vmul.f32 %v470, %v472
        %v475 = vsub.f32 2.0, %v473
        %v476 = vsub.f32 2.0, %v474
        %v477 = vmul.f32 %v471, %v475
        %v478 = vmul.f32 %v472, %v476
        %v479 = vmul.f32 %v462, %v477
        %v480 = vmul.f32 %v464, %v478
        %483 = vrot.lane.b32.xlu0 %v447, 8
        %v484 = vpop.permute.xlu0 %483
        %485 = vrot.lane.b32.xlu0 %v448, 8
        %v486 = vpop.permute.xlu0 %485
        %491 = vrot.lane.b32.xlu0 %v449, 16
        %v492 = vpop.permute.xlu0 %491
        %493 = vrot.lane.b32.xlu0 %v450, 16
        %v494 = vpop.permute.xlu0 %493
        %499 = vrot.lane.b32.xlu0 %v451, 24
        %v500 = vpop.permute.xlu0 %499
        %501 = vrot.lane.b32.xlu0 %v452, 24
        %v502 = vpop.permute.xlu0 %501
        %v505 = vsel %vm274, %v479, %v484
        %v506 = vsel %vm274, %v480, %v486
        %v507 = vsel %vm293, %v505, %v492
        %v508 = vsel %vm293, %v506, %v494
        %vm509 = vcmask 195584
        %v510 = vsel %vm509, %v507, %v500
        %v511 = vsel %vm509, %v508, %v502
        %v512 = vld [vmem:[%s3] sm:$0x1]
        %v514 = vperm.slane %v512, 0
        %v516 = vadd.f32 %v510, %v514
        %v517 = vadd.f32 %v511, %v514
        %518 = vst.msk [vmem:[%s232] sm:$0xff] %vm244, %v516
        %519 = vst.msk [vmem:[%s232 + $0x8] sm:$0xff] %vm244, %v517
        %s520 = sand.u32 %s123, 1
        %s521 = scalar_lea.sflag [#allocation4], %s520
        %s522 = sand.u32 %s123, 1
        %s523 = smul.addr %s522, 16
        %s524 = scalar_lea.vmem [#allocation5], %s523
        // Predicated region
        $region41: #{tpu_custom_call.1} parent=35 // pred_check
          %p525 = pneg %p133
        $region42: #{tpu_custom_call.1} parent=35 // pred_check_branch
          %527 = sbr.rel (%p525) target = $region44
        $region43: #{tpu_custom_call.1} parent=35 // pred_region
          %529 = vsyncadd %s521, 0
          %s530 = smul.addr %s21, 2
          %s531 = smul.addr %s530, 8
          %s532 = scalar_lea.hbm %s4, %s531
          %s533 = sshll.u32 %s524, 4
          %s534 = int_to_ptr.vmem [resolvable:$true] %s533
          %s535 = sshll.u32 %s532, 4
          %s536 = int_to_ptr.hbm [resolvable:$true] %s535
          %541 = dma.vmem_to_hbm [thread:$0]  %s534, 256, %s536, %s521, 128, 128, 8
        $region44: #{tpu_custom_call.1} parent=35 // pred_fallthru
          _
      $region36: #{tpu_custom_call.1} parent=5 // pred_fallthru
        _
      %p542 = scmp.le.s32.totalorder 2, %s16
      // Predicated region
      $region45: #{tpu_custom_call.1} parent=5 // pred_check
        %p543 = pneg %p542
      $region46: #{tpu_custom_call.1} parent=5 // pred_check_branch
        %545 = sbr.rel (%p543) target = $region48
      $region47: #{tpu_custom_call.1} parent=5 // pred_region
        %s546 = ssub.s32 %s16, 2
        // Predicated region
        $region49: #{tpu_custom_call.1} parent=47 // pred_check
          %p547 = pneg %p139
        $region50: #{tpu_custom_call.1} parent=47 // pred_check_branch
          %549 = sbr.rel (%p547) target = $region52
        $region51: #{tpu_custom_call.1} parent=47 // pred_region
          %s550 = sand.u32 %s124, 1
          %s551 = scalar_lea.sflag [#allocation4], %s550
          %s552 = sand.u32 %s124, 1
          %s553 = smul.addr %s552, 16
          %s554 = scalar_lea.vmem [#allocation5], %s553
          %556 = dma.done %s551, 256
        $region52: #{tpu_custom_call.1} parent=47 // pred_fallthru
          _
      $region48: #{tpu_custom_call.1} parent=5 // pred_fallthru
        _
    $region6: #{tpu_custom_call.1} parent=1 // loop_footer
      %s20 = sadd.s32 1, %s16
    $region7: #{tpu_custom_call.1} parent=1 // loop_footer_branch
      %15 = sbr.rel target = $region3
    $region8: #{tpu_custom_call.1} parent=1 // loop_exit
      _
    %557 = vsyncpa [#allocation3], 1
    %s558 = scalar_lea.sflag [#allocation3], 1
    %559 = vsyncpa %s558, 1
    %560 = vsyncpa [#allocation4], 1
    %s561 = scalar_lea.sflag [#allocation4], 1
    %562 = vsyncpa %s561, 1

</llo_original>
